<compile_context>
chip_gen: v7x
topology: tpu7x:2x2x1
jax: 0.10.0
libtpu: 0.0.40
codegen_flags: <defaults>
</compile_context>

<pallas_src>
import jax
import jax.numpy as jnp
from jax.experimental import pallas as pl
from jax.experimental.pallas import tpu as pltpu

LANE = 128
SUBLANE_BF16 = 16          # bf16 packs 16 rows per vreg (sub-32-bit sublane packing)
MEGACORE_MIN_BATCH = 128   # only split the batch across >=2 grid steps above this


def _round_up(n, m):
    return ((n + m - 1) // m) * m


def _cdiv(a, b):
    return -(-a // b)


# ---------------------------------------------------------------------------
# Pallas kernel: fused 4-layer MLP forward (one batch tile per grid step)
#   h1 = relu(x  @ W1 + b1)   (state_size -> 256)
#   h2 = relu(h1 @ W2 + b2)   (256        -> 64,  padded to 128)
#   h3 = relu(h2 @ W3 + b3)   (64->128 in -> 32,  padded to 128)
#   y  =       h3 @ W4 + b4   (32->128 in -> action_size, padded to 128)
# Weights/biases use a constant index_map so they stay resident in VMEM across
# batch tiles; x / out are tiled over the batch grid axis ("parallel" so v7x
# shards tiles across its 2 TensorCores). MXU inputs are bf16; accumulation,
# bias-add and ReLU stay in f32 (safe on v5e which has no bf16 VPU). The final
# store is bf16 to halve output HBM writeback.
# ---------------------------------------------------------------------------
def dqn_fwd_kernel(x_ref,
                   w1_ref, b1_ref,
                   w2_ref, b2_ref,
                   w3_ref, b3_ref,
                   w4_ref, b4_ref,
                   o_ref):
    # x is already bf16 (cast once in the wrapper).
    h = jnp.dot(x_ref[...], w1_ref[...],
                preferred_element_type=jnp.float32) + b1_ref[...]
    h = jnp.maximum(h, 0.0)

    h = jnp.dot(h.astype(jnp.bfloat16), w2_ref[...],
                preferred_element_type=jnp.float32) + b2_ref[...]
    h = jnp.maximum(h, 0.0)

    h = jnp.dot(h.astype(jnp.bfloat16), w3_ref[...],
                preferred_element_type=jnp.float32) + b3_ref[...]
    h = jnp.maximum(h, 0.0)

    y = jnp.dot(h.astype(jnp.bfloat16), w4_ref[...],
                preferred_element_type=jnp.float32) + b4_ref[...]
    o_ref[...] = y.astype(o_ref.dtype)          # bf16 store


def _choose_batch_tiling(B, tb):
    """Balanced batch tiling (no nearly-empty last tile) + megacore-friendly."""
    num_tiles = _cdiv(B, tb)
    # Guarantee >=2 grid steps for large batches so the "parallel" batch axis can
    # actually be sharded across v7x's 2 TensorCores. Never split tiny batches.
    if num_tiles == 1 and B >= MEGACORE_MIN_BATCH:
        num_tiles = 2
    TB = _round_up(_cdiv(B, num_tiles), SUBLANE_BF16)
    B_pad = num_tiles * TB
    return TB, B_pad, num_tiles


def dqn_forward(x, params, action_size, *, tb=512):
    """x: [B, state_size] f32/bf16. params: padded bf16 W1..W4 [in,out], f32 b1..b4 [1,out].

    Returns bf16 Q-values [B, action_size] (f32 accumulation inside the kernel).
    """
    B, S = x.shape
    TB, B_pad, num_tiles = _choose_batch_tiling(B, tb)

    # Cast x once in the wrapper: halves the x HBM->VMEM DMA bytes and removes a
    # per-tile VALU cast inside the kernel.
    x = x.astype(jnp.bfloat16)
    if B_pad != B:
        x = jnp.pad(x, ((0, B_pad - B), (0, 0)))

    out_pad = params["W4"].shape[1]

    weights = (params["W1"], params["b1"],
               params["W2"], params["b2"],
               params["W3"], params["b3"],
               params["W4"], params["b4"])

    # x / out tiled over the batch grid axis; input feature dim left unpadded.
    x_spec = pl.BlockSpec((TB, S), lambda i: (i, 0))
    # Constant index_map -> weights/biases stay VMEM-resident across batch tiles.
    w_specs = [pl.BlockSpec(w.shape, lambda i: (0, 0)) for w in weights]
    out_spec = pl.BlockSpec((TB, out_pad), lambda i: (i, 0))

    out = pl.pallas_call(
        dqn_fwd_kernel,
        out_shape=jax.ShapeDtypeStruct((B_pad, out_pad), jnp.bfloat16),
        grid=(num_tiles,),
        in_specs=[x_spec] + w_specs,
        out_specs=out_spec,
        compiler_params=pltpu.CompilerParams(
            dimension_semantics=("parallel",)),
    )(x, *weights)

    return out[:B, :action_size]


# ---------------------------------------------------------------------------
# Deterministic parameter init matching the PyTorch module's __init__:
#   - orthogonal weight init (torch.nn.init.orthogonal_), bias filled with 0.01
# Weights are generated in PyTorch's [out, in] convention, orthogonalized,
# transposed to [in, out], zero-padded to lane-dense widths, and cast to bf16
# (MXU-native input). Padded columns/rows are zero so the math is unchanged.
# ---------------------------------------------------------------------------
def orthogonal(key, out_dim, in_dim):
    rows, cols = out_dim, in_dim
    flat = jax.random.normal(key, (max(rows, cols), min(rows, cols)), dtype=jnp.float32)
    q, r = jnp.linalg.qr(flat)
    d = jnp.diagonal(r)
    q = q * jnp.where(d >= 0, 1.0, -1.0)[None, :]   # sign fix (no zero-sign pitfall)
    if rows < cols:
        q = q.T
    return q[:rows, :cols]


def init_dqn_params(state_size, action_size, key, weight_dtype=jnp.bfloat16):
    logical = [(state_size, 256), (256, 64), (64, 32), (32, action_size)]
    keys = jax.random.split(key, 4)
    params = {}
    prev_out_pad = state_size          # input feature dim is left unpadded (on purpose)
    for i, ((d_in, d_out), k) in enumerate(zip(logical, keys), start=1):
        d_in_pad = prev_out_pad
        d_out_pad = _round_up(d_out, LANE)
        w_torch = orthogonal(k, d_out, d_in)                 # [out, in] like nn.Linear.weight
        w = w_torch.T                                        # kernel layout [in, out]
        w_pad = jnp.zeros((d_in_pad, d_out_pad), jnp.float32).at[:d_in, :d_out].set(w)
        b_pad = jnp.zeros((1, d_out_pad), jnp.float32).at[:, :d_out].set(0.01)
        params[f"W{i}"] = w_pad.astype(weight_dtype)
        params[f"b{i}"] = b_pad
        prev_out_pad = d_out_pad
    return params


def dqn_forward_ref(x, params, action_size):
    """Pure-JAX reference using the same (padded, bf16) parameters / x cast."""
    h = x.astype(jnp.bfloat16).astype(jnp.float32)
    for i in range(1, 5):
        w = params[f"W{i}"].astype(jnp.float32)
        b = params[f"b{i}"]
        h = h @ w + b
        if i < 4:
            h = jnp.maximum(h, 0.0)
            h = h.astype(jnp.bfloat16).astype(jnp.float32)   # match kernel's bf16 MXU inputs
    return h[:, :action_size]


# TODO(synk): the optim.Adam optimizer / training step from __init__ is not part
# of the forward pass and is not implemented here.

if __name__ == "__main__":
    state_size = 8
    action_size = 4
    batch = 2

    key = jax.random.PRNGKey(0)
    k_x, k_p = jax.random.split(key)

    x = jax.random.normal(k_x, (batch, state_size), dtype=jnp.float32)
    params = init_dqn_params(state_size, action_size, k_p)

    out = dqn_forward(x, params, action_size)
    out = jax.block_until_ready(out)

    ref = dqn_forward_ref(x, params, action_size)
    assert out.shape == (batch, action_size)
    # Output is bf16 (halved HBM writeback); compare with bf16-level tolerance.
    assert jnp.allclose(out.astype(jnp.float32), ref, atol=2e-2, rtol=2e-2)

    print("KERNEL_OK")
</pallas_src>

<mosaic_0001>
module attributes {stable_mosaic.version = 11 : i64} {
  func.func @dqn_fwd_kernel(%arg0: i32, %arg1: memref<16x8xbf16, #tpu.memory_space<vmem>>, %arg2: memref<8x256xbf16, #tpu.memory_space<vmem>>, %arg3: memref<1x256xf32, #tpu.memory_space<vmem>>, %arg4: memref<256x128xbf16, #tpu.memory_space<vmem>>, %arg5: memref<1x128xf32, #tpu.memory_space<vmem>>, %arg6: memref<128x128xbf16, #tpu.memory_space<vmem>>, %arg7: memref<1x128xf32, #tpu.memory_space<vmem>>, %arg8: memref<128x128xbf16, #tpu.memory_space<vmem>>, %arg9: memref<1x128xf32, #tpu.memory_space<vmem>>, %arg10: memref<16x128xbf16, #tpu.memory_space<vmem>>) attributes {dimension_semantics = [#tpu.dimension_semantics<parallel>], iteration_bounds = array<i64: 1>, scalar_prefetch = 0 : i64, scratch_operands = 0 : i64, tpu.core_type = #tpu.core_type<tc>, window_params = [{transform_indices = @transform_0, window_bounds = array<i64: 16, 8>}, {pipeline_mode = #tpu.pipeline_mode<synchronous>, transform_indices = @transform_1, window_bounds = array<i64: 8, 256>}, {pipeline_mode = #tpu.pipeline_mode<synchronous>, transform_indices = @transform_2, window_bounds = array<i64: 1, 256>}, {pipeline_mode = #tpu.pipeline_mode<synchronous>, transform_indices = @transform_3, window_bounds = array<i64: 256, 128>}, {pipeline_mode = #tpu.pipeline_mode<synchronous>, transform_indices = @transform_4, window_bounds = array<i64: 1, 128>}, {pipeline_mode = #tpu.pipeline_mode<synchronous>, transform_indices = @transform_5, window_bounds = array<i64: 128, 128>}, {pipeline_mode = #tpu.pipeline_mode<synchronous>, transform_indices = @transform_6, window_bounds = array<i64: 1, 128>}, {pipeline_mode = #tpu.pipeline_mode<synchronous>, transform_indices = @transform_7, window_bounds = array<i64: 128, 128>}, {pipeline_mode = #tpu.pipeline_mode<synchronous>, transform_indices = @transform_8, window_bounds = array<i64: 1, 128>}, {transform_indices = @transform_9, window_bounds = array<i64: 16, 128>}]} {
    %c0 = arith.constant 0 : index
    %c0_0 = arith.constant 0 : index
    %0 = vector.load %arg1[%c0, %c0_0] : memref<16x8xbf16, #tpu.memory_space<vmem>>, vector<16x8xbf16>
    %c0_1 = arith.constant 0 : index
    %c0_2 = arith.constant 0 : index
    %1 = vector.load %arg2[%c0_1, %c0_2] : memref<8x256xbf16, #tpu.memory_space<vmem>>, vector<8x256xbf16>
    %cst = arith.constant dense<0.000000e+00> : vector<16x256xf32>
    %2 = tpu.matmul %0, %1, %cst {dimension_numbers = #tpu.dot_dimension_numbers<[1], [0], [0], [1], [0, 0, 1, 1], [], []>} : vector<16x8xbf16>, vector<8x256xbf16>, vector<16x256xf32> -> vector<16x256xf32>
    %c0_3 = arith.constant 0 : index
    %c0_4 = arith.constant 0 : index
    %3 = vector.load %arg3[%c0_3, %c0_4] : memref<1x256xf32, #tpu.memory_space<vmem>>, vector<1x256xf32>
    %4 = vector.broadcast %3 : vector<1x256xf32> to vector<16x256xf32>
    %5 = arith.addf %2, %4 : vector<16x256xf32>
    %cst_5 = arith.constant 0.000000e+00 : f32
    %6 = vector.broadcast %cst_5 : f32 to vector<16x256xf32>
    %7 = arith.maximumf %5, %6 : vector<16x256xf32>
    %8 = arith.truncf %7 : vector<16x256xf32> to vector<16x256xbf16>
    %c0_6 = arith.constant 0 : index
    %c0_7 = arith.constant 0 : index
    %9 = vector.load %arg4[%c0_6, %c0_7] : memref<256x128xbf16, #tpu.memory_space<vmem>>, vector<256x128xbf16>
    %cst_8 = arith.constant dense<0.000000e+00> : vector<16x128xf32>
    %10 = tpu.matmul %8, %9, %cst_8 {dimension_numbers = #tpu.dot_dimension_numbers<[1], [0], [0], [1], [0, 0, 1, 1], [], []>} : vector<16x256xbf16>, vector<256x128xbf16>, vector<16x128xf32> -> vector<16x128xf32>
    %c0_9 = arith.constant 0 : index
    %c0_10 = arith.constant 0 : index
    %11 = vector.load %arg5[%c0_9, %c0_10] : memref<1x128xf32, #tpu.memory_space<vmem>>, vector<1x128xf32>
    %12 = vector.broadcast %11 : vector<1x128xf32> to vector<16x128xf32>
    %13 = arith.addf %10, %12 : vector<16x128xf32>
    %cst_11 = arith.constant 0.000000e+00 : f32
    %14 = vector.broadcast %cst_11 : f32 to vector<16x128xf32>
    %15 = arith.maximumf %13, %14 : vector<16x128xf32>
    %16 = arith.truncf %15 : vector<16x128xf32> to vector<16x128xbf16>
    %c0_12 = arith.constant 0 : index
    %c0_13 = arith.constant 0 : index
    %17 = vector.load %arg6[%c0_12, %c0_13] : memref<128x128xbf16, #tpu.memory_space<vmem>>, vector<128x128xbf16>
    %cst_14 = arith.constant dense<0.000000e+00> : vector<16x128xf32>
    %18 = tpu.matmul %16, %17, %cst_14 {dimension_numbers = #tpu.dot_dimension_numbers<[1], [0], [0], [1], [0, 0, 1, 1], [], []>} : vector<16x128xbf16>, vector<128x128xbf16>, vector<16x128xf32> -> vector<16x128xf32>
    %c0_15 = arith.constant 0 : index
    %c0_16 = arith.constant 0 : index
    %19 = vector.load %arg7[%c0_15, %c0_16] : memref<1x128xf32, #tpu.memory_space<vmem>>, vector<1x128xf32>
    %20 = vector.broadcast %19 : vector<1x128xf32> to vector<16x128xf32>
    %21 = arith.addf %18, %20 : vector<16x128xf32>
    %cst_17 = arith.constant 0.000000e+00 : f32
    %22 = vector.broadcast %cst_17 : f32 to vector<16x128xf32>
    %23 = arith.maximumf %21, %22 : vector<16x128xf32>
    %24 = arith.truncf %23 : vector<16x128xf32> to vector<16x128xbf16>
    %c0_18 = arith.constant 0 : index
    %c0_19 = arith.constant 0 : index
    %25 = vector.load %arg8[%c0_18, %c0_19] : memref<128x128xbf16, #tpu.memory_space<vmem>>, vector<128x128xbf16>
    %cst_20 = arith.constant dense<0.000000e+00> : vector<16x128xf32>
    %26 = tpu.matmul %24, %25, %cst_20 {dimension_numbers = #tpu.dot_dimension_numbers<[1], [0], [0], [1], [0, 0, 1, 1], [], []>} : vector<16x128xbf16>, vector<128x128xbf16>, vector<16x128xf32> -> vector<16x128xf32>
    %c0_21 = arith.constant 0 : index
    %c0_22 = arith.constant 0 : index
    %27 = vector.load %arg9[%c0_21, %c0_22] : memref<1x128xf32, #tpu.memory_space<vmem>>, vector<1x128xf32>
    %28 = vector.broadcast %27 : vector<1x128xf32> to vector<16x128xf32>
    %29 = arith.addf %26, %28 : vector<16x128xf32>
    %30 = arith.truncf %29 : vector<16x128xf32> to vector<16x128xbf16>
    %c0_23 = arith.constant 0 : index
    %c0_24 = arith.constant 0 : index
    %31 = vector.load %arg10[%c0_23, %c0_24] : memref<16x128xbf16, #tpu.memory_space<vmem>>, vector<16x128xbf16>
    tpu.vector_store %arg10[%c0_23, %c0_24], %30 {strides = array<i32>} : memref<16x128xbf16, #tpu.memory_space<vmem>>, vector<16x128xbf16>,
    return
  }
  func.func @transform_0(%arg0: i32) -> (i32, i32) {
    %c0_i32 = arith.constant 0 : i32
    %c0_i32_0 = arith.constant 0 : i32
    return %arg0, %c0_i32 : i32, i32
  }
  func.func @transform_1(%arg0: i32) -> (i32, i32) {
    %c0_i32 = arith.constant 0 : i32
    %c0_i32_0 = arith.constant 0 : i32
    %c0_i32_1 = arith.constant 0 : i32
    return %c0_i32, %c0_i32_0 : i32, i32
  }
  func.func @transform_2(%arg0: i32) -> (i32, i32) {
    %c0_i32 = arith.constant 0 : i32
    %c0_i32_0 = arith.constant 0 : i32
    %c0_i32_1 = arith.constant 0 : i32
    return %c0_i32, %c0_i32_0 : i32, i32
  }
  func.func @transform_3(%arg0: i32) -> (i32, i32) {
    %c0_i32 = arith.constant 0 : i32
    %c0_i32_0 = arith.constant 0 : i32
    %c0_i32_1 = arith.constant 0 : i32
    return %c0_i32, %c0_i32_0 : i32, i32
  }
  func.func @transform_4(%arg0: i32) -> (i32, i32) {
    %c0_i32 = arith.constant 0 : i32
    %c0_i32_0 = arith.constant 0 : i32
    %c0_i32_1 = arith.constant 0 : i32
    return %c0_i32, %c0_i32_0 : i32, i32
  }
  func.func @transform_5(%arg0: i32) -> (i32, i32) {
    %c0_i32 = arith.constant 0 : i32
    %c0_i32_0 = arith.constant 0 : i32
    %c0_i32_1 = arith.constant 0 : i32
    return %c0_i32, %c0_i32_0 : i32, i32
  }
  func.func @transform_6(%arg0: i32) -> (i32, i32) {
    %c0_i32 = arith.constant 0 : i32
    %c0_i32_0 = arith.constant 0 : i32
    %c0_i32_1 = arith.constant 0 : i32
    return %c0_i32, %c0_i32_0 : i32, i32
  }
  func.func @transform_7(%arg0: i32) -> (i32, i32) {
    %c0_i32 = arith.constant 0 : i32
    %c0_i32_0 = arith.constant 0 : i32
    %c0_i32_1 = arith.constant 0 : i32
    return %c0_i32, %c0_i32_0 : i32, i32
  }
  func.func @transform_8(%arg0: i32) -> (i32, i32) {
    %c0_i32 = arith.constant 0 : i32
    %c0_i32_0 = arith.constant 0 : i32
    %c0_i32_1 = arith.constant 0 : i32
    return %c0_i32, %c0_i32_0 : i32, i32
  }
  func.func @transform_9(%arg0: i32) -> (i32, i32) {
    %c0_i32 = arith.constant 0 : i32
    %c0_i32_0 = arith.constant 0 : i32
    return %arg0, %c0_i32 : i32, i32
  }
}

</mosaic_0001>

<llo_original>
// kernel: tpu_custom_call.1
$region0: #{tpu_custom_call.1}
  #allocation0 [shape = 'u32[]', space=smem, size = 0x4, offset = 0x4, fixed_abs, tag = 'smem constant byte address 0x4 - core index']
  #allocation1 [shape = 'u32[144,128]{1,0:T(1,128)}', space=vmem, size = 0x12000, scoped, tag = 'internal scratch']
  %s0 = inlined_call_operand.vmem [shape: bf16[16,8], index: 0, kind: input, shape index: {}]
  %s1 = inlined_call_operand.vmem [shape: bf16[8,256], index: 1, kind: input, shape index: {}]
  %s2 = inlined_call_operand.vmem [shape: f32[1,256], index: 2, kind: input, shape index: {}]
  %s3 = inlined_call_operand.hbm [shape: bf16[256,128], index: 3, kind: input, shape index: {}]
  %s4 = inlined_call_operand.vmem [shape: f32[1,128], index: 4, kind: input, shape index: {}]
  %s5 = inlined_call_operand.hbm [shape: bf16[128,128], index: 5, kind: input, shape index: {}]
  %s6 = inlined_call_operand.vmem [shape: f32[1,128], index: 6, kind: input, shape index: {}]
  %s7 = inlined_call_operand.hbm [shape: bf16[128,128], index: 7, kind: input, shape index: {}]
  %s8 = inlined_call_operand.vmem [shape: f32[1,128], index: 8, kind: input, shape index: {}]
  %s9 = inlined_call_operand.hbm [shape: bf16[16,128], index: 9, kind: output, shape index: {}]
  %s10 = sld [smem:[#allocation0]]
  $region58: #{tpu_custom_call.1} parent=0
    _
  %s12 = ssub.s32 1, %s10
  %s13 = scalar_select 0, %s12, %s10
  $region1: #{tpu_custom_call.1} parent=0
    #allocation2 [shape = 'u8[65536]{0}', space=vmem, size = 0x10000, scoped, tag = 'input window, operand 3, single buffered']
    #allocation3 [shape = 's32[1]{0}', space=sflag, size = 0x4, scoped, tag = 'scoped memory for tpu_custom_call.1']
    #allocation4 [shape = 's32[1]{0}', space=sflag, size = 0x4, scoped, tag = 'scoped memory for tpu_custom_call.1']
    #allocation5 [shape = 'u8[32768]{0}', space=vmem, size = 0x8000, scoped, tag = 'input window, operand 5, single buffered']
    #allocation6 [shape = 's32[1]{0}', space=sflag, size = 0x4, scoped, tag = 'scoped memory for tpu_custom_call.1']
    #allocation7 [shape = 'u8[32768]{0}', space=vmem, size = 0x8000, scoped, tag = 'input window, operand 7, single buffered']
    #allocation8 [shape = 'u8[4096]{0}', space=vmem, size = 0x1000, scoped, tag = 'output window, operand 0, single buffered']
    %14 = vsyncpa [#allocation3], 0
    %15 = vsyncpa [#allocation6], 0
    %16 = vsyncpa [#allocation4], 0
    // Predicated region
    $region2: #{tpu_custom_call.1} parent=1 // pred_check
      _
    $region3: #{tpu_custom_call.1} parent=1 // pred_check_branch
      %18 = sbr.rel (0) target = $region5
    $region4: #{tpu_custom_call.1} parent=1 // pred_region
      _
    $region5: #{tpu_custom_call.1} parent=1 // pred_fallthru
      _
    // Predicated region
    $region6: #{tpu_custom_call.1} parent=1 // pred_check
      _
    $region7: #{tpu_custom_call.1} parent=1 // pred_check_branch
      %20 = sbr.rel (0) target = $region9
    $region8: #{tpu_custom_call.1} parent=1 // pred_region
      _
    $region9: #{tpu_custom_call.1} parent=1 // pred_fallthru
      _
    // Predicated region
    $region10: #{tpu_custom_call.1} parent=1 // pred_check
      _
    $region11: #{tpu_custom_call.1} parent=1 // pred_check_branch
      %22 = sbr.rel (0) target = $region13
    $region12: #{tpu_custom_call.1} parent=1 // pred_region
      _
    $region13: #{tpu_custom_call.1} parent=1 // pred_fallthru
      _
    // Predicated region
    $region14: #{tpu_custom_call.1} parent=1 // pred_check
      _
    $region15: #{tpu_custom_call.1} parent=1 // pred_check_branch
      %24 = sbr.rel (0) target = $region17
    $region16: #{tpu_custom_call.1} parent=1 // pred_region
      %s26 = ssub.s32 2048, 2048
      %27 = vsyncadd [#allocation3], %s26
      %s28 = sshll.u32 [#allocation2], 4
      %s29 = int_to_ptr.vmem [resolvable:$true] %s28
      %34 = dma.hbm_to_vmem [thread:$0]  %s3, 2048, %s29, [#allocation3], 64, 64, 4
    $region17: #{tpu_custom_call.1} parent=1 // pred_fallthru
      _
    // Predicated region
    $region18: #{tpu_custom_call.1} parent=1 // pred_check
      _
    $region19: #{tpu_custom_call.1} parent=1 // pred_check_branch
      %36 = sbr.rel (0) target = $region21
    $region20: #{tpu_custom_call.1} parent=1 // pred_region
      _
    $region21: #{tpu_custom_call.1} parent=1 // pred_fallthru
      _
    // Predicated region
    $region22: #{tpu_custom_call.1} parent=1 // pred_check
      _
    $region23: #{tpu_custom_call.1} parent=1 // pred_check_branch
      %38 = sbr.rel (0) target = $region25
    $region24: #{tpu_custom_call.1} parent=1 // pred_region
      %s40 = ssub.s32 1024, 1024
      %41 = vsyncadd [#allocation6], %s40
      %s42 = sshll.u32 [#allocation5], 4
      %s43 = int_to_ptr.vmem [resolvable:$true] %s42
      %48 = dma.hbm_to_vmem [thread:$0]  %s5, 1024, %s43, [#allocation6], 64, 64, 4
    $region25: #{tpu_custom_call.1} parent=1 // pred_fallthru
      _
    // Predicated region
    $region26: #{tpu_custom_call.1} parent=1 // pred_check
      _
    $region27: #{tpu_custom_call.1} parent=1 // pred_check_branch
      %50 = sbr.rel (0) target = $region29
    $region28: #{tpu_custom_call.1} parent=1 // pred_region
      _
    $region29: #{tpu_custom_call.1} parent=1 // pred_fallthru
      _
    // Predicated region
    $region30: #{tpu_custom_call.1} parent=1 // pred_check
      _
    $region31: #{tpu_custom_call.1} parent=1 // pred_check_branch
      %52 = sbr.rel (0) target = $region33
    $region32: #{tpu_custom_call.1} parent=1 // pred_region
      %s54 = ssub.s32 1024, 1024
      %55 = vsyncadd [#allocation6], %s54
      %s56 = sshll.u32 [#allocation7], 4
      %s57 = int_to_ptr.vmem [resolvable:$true] %s56
      %62 = dma.hbm_to_vmem [thread:$0]  %s7, 1024, %s57, [#allocation6], 64, 64, 4
    $region33: #{tpu_custom_call.1} parent=1 // pred_fallthru
      _
    // Predicated region
    $region34: #{tpu_custom_call.1} parent=1 // pred_check
      _
    $region35: #{tpu_custom_call.1} parent=1 // pred_check_branch
      %64 = sbr.rel (0) target = $region37
    $region36: #{tpu_custom_call.1} parent=1 // pred_region
      _
    $region37: #{tpu_custom_call.1} parent=1 // pred_fallthru
      _
    // Predicated region
    $region38: #{tpu_custom_call.1} parent=1 // pred_check
      _
    $region39: #{tpu_custom_call.1} parent=1 // pred_check_branch
      %66 = sbr.rel (0) target = $region41
    $region40: #{tpu_custom_call.1} parent=1 // pred_region
      %67 = dma.done [#allocation3], 2048
    $region41: #{tpu_custom_call.1} parent=1 // pred_fallthru
      _
    // Predicated region
    $region42: #{tpu_custom_call.1} parent=1 // pred_check
      _
    $region43: #{tpu_custom_call.1} parent=1 // pred_check_branch
      %69 = sbr.rel (0) target = $region45
    $region44: #{tpu_custom_call.1} parent=1 // pred_region
      %70 = dma.done [#allocation6], 1024
    $region45: #{tpu_custom_call.1} parent=1 // pred_fallthru
      _
    // Predicated region
    $region46: #{tpu_custom_call.1} parent=1 // pred_check
      _
    $region47: #{tpu_custom_call.1} parent=1 // pred_check_branch
      %72 = sbr.rel (0) target = $region49
    $region48: #{tpu_custom_call.1} parent=1 // pred_region
      %73 = dma.done [#allocation6], 1024
    $region49: #{tpu_custom_call.1} parent=1 // pred_fallthru
      _
    %v75 = vld [vmem:[%s0] sm:$0xf]
    %v76 = vld [vmem:[%s0 + $0x4] sm:$0xf]
    %v77 = vld [vmem:[%s1] sm:$0xff]
    %v78 = vld [vmem:[%s2] sm:$0x3]
    %v80 = vlaneseq
    %v81 = vshrl.u32 %v80, 7
    %v82 = vsub.s32 0, %v81
    %v83 = vrot.slane %v78, %v82
    %v84 = vlaneseq
    %v85 = vshrl.u32 %v84, 7
    %v86 = vsub.s32 1, %v85
    %v87 = vrot.slane %v78, %v86
    %v92 = vunpack.c.l.b16 %v75
    %v93 = vunpack.c.l.b16 %v76
    %v94 = vpack.c.b16 %v93, %v92
    %v96 = vunpack.c.l.b16 %v77
    %v97 = vunpack.c.h.b16 %v77
    %v98 = vpack.c.b16 %v96, %v96
    %v99 = vpack.c.b16 %v97, %v97
    %vm100 = vcmask 64512
    %v102 = vsel %vm100, %v94, 0
    %vm104 = vcmask 1043456
    %v106 = vsel %vm104, %v98, 0
    %v109 = vsel %vm104, %v99, 0
    %111 = vmatprep.subr.bf16.mxu0 %v109
    %112 = vmatpush1.bf16.msra.mxu0 %v106
    %113 = vmatprep.subr.bf16.mxu0 0
    %114 = vmatpush1.bf16.msra.mxu0 0
    %115 = vmatprep.subr.bf16.mxu0 0
    %116 = vmatpush1.bf16.msra.mxu0 0
    %117 = vmatprep.subr.bf16.mxu0 0
    %118 = vmatpush1.bf16.msra.mxu0 0
    %119 = vmatprep.subr.bf16.mxu0 0
    %120 = vmatpush1.bf16.msra.mxu0 0
    %121 = vmatprep.subr.bf16.mxu0 0
    %122 = vmatpush1.bf16.msra.mxu0 0
    %123 = vmatprep.subr.bf16.mxu0 0
    %124 = vmatpush1.bf16.msra.mxu0 0
    %125 = vmatprep.subr.bf16.mxu0 0
    %126 = vmatpush1.bf16.msra.mxu0 0
    %127 = vmatprep.subr.bf16.mxu0 0
    %128 = vmatpush1.bf16.msra.mxu0 0
    %129 = vmatprep.subr.bf16.mxu0 0
    %130 = vmatpush1.bf16.msra.mxu0 0
    %131 = vmatprep.subr.bf16.mxu0 0
    %132 = vmatpush1.bf16.msra.mxu0 0
    %133 = vmatprep.subr.bf16.mxu0 0
    %134 = vmatpush1.bf16.msra.mxu0 0
    %135 = vmatprep.subr.bf16.mxu0 0
    %136 = vmatpush1.bf16.msra.mxu0 0
    %137 = vmatprep.subr.bf16.mxu0 0
    %138 = vmatpush1.bf16.msra.mxu0 0
    %139 = vmatprep.subr.bf16.mxu0 0
    %140 = vmatpush1.bf16.msra.mxu0 0
    %141 = vmatprep.subr.bf16.mxu0 0
    %142 = vmatpush1.bf16.msra.mxu0 0
    %143 = vmatprep.mubr.bf16.mxu0 0
    %144 = vmatmul.mubr.bf16.gmra.mrb[0].mxu0 %v102
    %v145 = vpop.f32.mrb[0].mxu0
    %v146 = vadd.f32 %v83, %v145
    %v147 = vpop.f32.mrb[0].mxu0
    %v148 = vadd.f32 %v87, %v147
    %v149 = vpop.f32.mrb[0].mxu0
    %v150 = vadd.f32 %v83, %v149
    %v151 = vpop.f32.mrb[0].mxu0
    %v152 = vadd.f32 %v87, %v151
    %153 = vdwg.mxu0
    %v154 = vmax.f32 %v146, 0.0
    %v155 = vmax.f32 %v148, 0.0
    %v156 = vmax.f32 %v150, 0.0
    %v157 = vmax.f32 %v152, 0.0
    %v158 = vpack.c.bf16 %v156, %v154
    %v159 = vpack.c.bf16 %v157, %v155
    %v160 = vld [vmem:[#allocation2] sm:$0xf]
    %v161 = vld [vmem:[#allocation2 + $0x4] sm:$0xf]
    %v162 = vld [vmem:[#allocation2 + $0x8] sm:$0xf]
    %v163 = vld [vmem:[#allocation2 + $0xc] sm:$0xf]
    %v164 = vld [vmem:[#allocation2 + $0x10] sm:$0xf]
    %v165 = vld [vmem:[#allocation2 + $0x14] sm:$0xf]
    %v166 = vld [vmem:[#allocation2 + $0x18] sm:$0xf]
    %v167 = vld [vmem:[#allocation2 + $0x1c] sm:$0xf]
    %v168 = vld [vmem:[#allocation2 + $0x20] sm:$0xf]
    %v169 = vld [vmem:[#allocation2 + $0x24] sm:$0xf]
    %v170 = vld [vmem:[#allocation2 + $0x28] sm:$0xf]
    %v171 = vld [vmem:[#allocation2 + $0x2c] sm:$0xf]
    %v172 = vld [vmem:[#allocation2 + $0x30] sm:$0xf]
    %v173 = vld [vmem:[#allocation2 + $0x34] sm:$0xf]
    %v174 = vld [vmem:[#allocation2 + $0x38] sm:$0xf]
    %v175 = vld [vmem:[#allocation2 + $0x3c] sm:$0xf]
    %v176 = vld [vmem:[#allocation2 + $0x40] sm:$0xf]
    %v177 = vld [vmem:[#allocation2 + $0x44] sm:$0xf]
    %v178 = vld [vmem:[#allocation2 + $0x48] sm:$0xf]
    %v179 = vld [vmem:[#allocation2 + $0x4c] sm:$0xf]
    %v180 = vld [vmem:[#allocation2 + $0x50] sm:$0xf]
    %v181 = vld [vmem:[#allocation2 + $0x54] sm:$0xf]
    %v182 = vld [vmem:[#allocation2 + $0x58] sm:$0xf]
    %v183 = vld [vmem:[#allocation2 + $0x5c] sm:$0xf]
    %v184 = vld [vmem:[#allocation2 + $0x60] sm:$0xf]
    %v185 = vld [vmem:[#allocation2 + $0x64] sm:$0xf]
    %v186 = vld [vmem:[#allocation2 + $0x68] sm:$0xf]
    %v187 = vld [vmem:[#allocation2 + $0x6c] sm:$0xf]
    %v188 = vld [vmem:[#allocation2 + $0x70] sm:$0xf]
    %v189 = vld [vmem:[#allocation2 + $0x74] sm:$0xf]
    %v190 = vld [vmem:[#allocation2 + $0x78] sm:$0xf]
    %v191 = vld [vmem:[#allocation2 + $0x7c] sm:$0xf]
    %v192 = vld [vmem:[%s4] sm:$0x1]
    %v194 = vlaneseq
    %v195 = vshrl.u32 %v194, 7
    %v196 = vsub.s32 0, %v195
    %v197 = vrot.slane %v192, %v196
    %v231 = vunpack.c.l.b16 %v160
    %v232 = vunpack.c.l.b16 %v161
    %v233 = vunpack.c.l.b16 %v162
    %v234 = vunpack.c.l.b16 %v163
    %v235 = vunpack.c.l.b16 %v164
    %v236 = vunpack.c.l.b16 %v165
    %v237 = vunpack.c.l.b16 %v166
    %v238 = vunpack.c.l.b16 %v167
    %v239 = vunpack.c.l.b16 %v168
    %v240 = vunpack.c.l.b16 %v169
    %v241 = vunpack.c.l.b16 %v170
    %v242 = vunpack.c.l.b16 %v171
    %v243 = vunpack.c.l.b16 %v172
    %v244 = vunpack.c.l.b16 %v173
    %v245 = vunpack.c.l.b16 %v174
    %v246 = vunpack.c.l.b16 %v175
    %v247 = vunpack.c.l.b16 %v176
    %v248 = vunpack.c.l.b16 %v177
    %v249 = vunpack.c.l.b16 %v178
    %v250 = vunpack.c.l.b16 %v179
    %v251 = vunpack.c.l.b16 %v180
    %v252 = vunpack.c.l.b16 %v181
    %v253 = vunpack.c.l.b16 %v182
    %v254 = vunpack.c.l.b16 %v183
    %v255 = vunpack.c.l.b16 %v184
    %v256 = vunpack.c.l.b16 %v185
    %v257 = vunpack.c.l.b16 %v186
    %v258 = vunpack.c.l.b16 %v187
    %v259 = vunpack.c.l.b16 %v188
    %v260 = vunpack.c.l.b16 %v189
    %v261 = vunpack.c.l.b16 %v190
    %v262 = vunpack.c.l.b16 %v191
    %v263 = vpack.c.b16 %v232, %v231
    %v264 = vpack.c.b16 %v234, %v233
    %v265 = vpack.c.b16 %v236, %v235
    %v266 = vpack.c.b16 %v238, %v237
    %v267 = vpack.c.b16 %v240, %v239
    %v268 = vpack.c.b16 %v242, %v241
    %v269 = vpack.c.b16 %v244, %v243
    %v270 = vpack.c.b16 %v246, %v245
    %v271 = vpack.c.b16 %v248, %v247
    %v272 = vpack.c.b16 %v250, %v249
    %v273 = vpack.c.b16 %v252, %v251
    %v274 = vpack.c.b16 %v254, %v253
    %v275 = vpack.c.b16 %v256, %v255
    %v276 = vpack.c.b16 %v258, %v257
    %v277 = vpack.c.b16 %v260, %v259
    %v278 = vpack.c.b16 %v262, %v261
    %295 = vmatprep.subr.bf16.mxu0 0
    %296 = vmatpush1.bf16.msra.mxu0 %v263
    %297 = vmatprep.subr.bf16.mxu0 0
    %298 = vmatpush1.bf16.msra.mxu0 %v264
    %299 = vmatprep.subr.bf16.mxu0 0
    %300 = vmatpush1.bf16.msra.mxu0 %v265
    %301 = vmatprep.subr.bf16.mxu0 0
    %302 = vmatpush1.bf16.msra.mxu0 %v266
    %303 = vmatprep.subr.bf16.mxu0 0
    %304 = vmatpush1.bf16.msra.mxu0 %v267
    %305 = vmatprep.subr.bf16.mxu0 0
    %306 = vmatpush1.bf16.msra.mxu0 %v268
    %307 = vmatprep.subr.bf16.mxu0 0
    %308 = vmatpush1.bf16.msra.mxu0 %v269
    %309 = vmatprep.subr.bf16.mxu0 0
    %310 = vmatpush1.bf16.msra.mxu0 %v270
    %311 = vmatprep.subr.bf16.mxu0 0
    %312 = vmatpush1.bf16.msra.mxu0 %v271
    %313 = vmatprep.subr.bf16.mxu0 0
    %314 = vmatpush1.bf16.msra.mxu0 %v272
    %315 = vmatprep.subr.bf16.mxu0 0
    %316 = vmatpush1.bf16.msra.mxu0 %v273
    %317 = vmatprep.subr.bf16.mxu0 0
    %318 = vmatpush1.bf16.msra.mxu0 %v274
    %319 = vmatprep.subr.bf16.mxu0 0
    %320 = vmatpush1.bf16.msra.mxu0 %v275
    %321 = vmatprep.subr.bf16.mxu0 0
    %322 = vmatpush1.bf16.msra.mxu0 %v276
    %323 = vmatprep.subr.bf16.mxu0 0
    %324 = vmatpush1.bf16.msra.mxu0 %v277
    %325 = vmatprep.subr.bf16.mxu0 0
    %326 = vmatpush1.bf16.msra.mxu0 %v278
    %327 = vmatprep.mubr.bf16.mxu0 %v159
    %328 = vmatmul.mubr.bf16.gmra.mrb[0].mxu0 %v158
    %v329 = vpop.f32.mrb[0].mxu0
    %v330 = vadd.f32 %v197, %v329
    %v331 = vpop.f32.mrb[0].mxu0
    %v332 = vpop.f32.mrb[0].mxu0
    %v333 = vadd.f32 %v197, %v332
    %v334 = vpop.f32.mrb[0].mxu0
    %335 = vdwg.mxu0
    %v336 = vmax.f32 %v330, 0.0
    %v337 = vmax.f32 %v333, 0.0
    %v338 = vpack.c.bf16 %v337, %v336
    %v339 = vld [vmem:[#allocation5] sm:$0xf]
    %v340 = vld [vmem:[#allocation5 + $0x4] sm:$0xf]
    %v341 = vld [vmem:[#allocation5 + $0x8] sm:$0xf]
    %v342 = vld [vmem:[#allocation5 + $0xc] sm:$0xf]
    %v343 = vld [vmem:[#allocation5 + $0x10] sm:$0xf]
    %v344 = vld [vmem:[#allocation5 + $0x14] sm:$0xf]
    %v345 = vld [vmem:[#allocation5 + $0x18] sm:$0xf]
    %v346 = vld [vmem:[#allocation5 + $0x1c] sm:$0xf]
    %v347 = vld [vmem:[#allocation5 + $0x20] sm:$0xf]
    %v348 = vld [vmem:[#allocation5 + $0x24] sm:$0xf]
    %v349 = vld [vmem:[#allocation5 + $0x28] sm:$0xf]
    %v350 = vld [vmem:[#allocation5 + $0x2c] sm:$0xf]
    %v351 = vld [vmem:[#allocation5 + $0x30] sm:$0xf]
    %v352 = vld [vmem:[#allocation5 + $0x34] sm:$0xf]
    %v353 = vld [vmem:[#allocation5 + $0x38] sm:$0xf]
    %v354 = vld [vmem:[#allocation5 + $0x3c] sm:$0xf]
    %v355 = vld [vmem:[%s6] sm:$0x1]
    %v357 = vlaneseq
    %v358 = vshrl.u32 %v357, 7
    %v359 = vsub.s32 0, %v358
    %v360 = vrot.slane %v355, %v359
    %v378 = vunpack.c.l.b16 %v339
    %v379 = vunpack.c.l.b16 %v340
    %v380 = vunpack.c.l.b16 %v341
    %v381 = vunpack.c.l.b16 %v342
    %v382 = vunpack.c.l.b16 %v343
    %v383 = vunpack.c.l.b16 %v344
    %v384 = vunpack.c.l.b16 %v345
    %v385 = vunpack.c.l.b16 %v346
    %v386 = vunpack.c.l.b16 %v347
    %v387 = vunpack.c.l.b16 %v348
    %v388 = vunpack.c.l.b16 %v349
    %v389 = vunpack.c.l.b16 %v350
    %v390 = vunpack.c.l.b16 %v351
    %v391 = vunpack.c.l.b16 %v352
    %v392 = vunpack.c.l.b16 %v353
    %v393 = vunpack.c.l.b16 %v354
    %v394 = vpack.c.b16 %v379, %v378
    %v395 = vpack.c.b16 %v381, %v380
    %v396 = vpack.c.b16 %v383, %v382
    %v397 = vpack.c.b16 %v385, %v384
    %v398 = vpack.c.b16 %v387, %v386
    %v399 = vpack.c.b16 %v389, %v388
    %v400 = vpack.c.b16 %v391, %v390
    %v401 = vpack.c.b16 %v393, %v392
    %410 = vmatprep.subr.bf16.mxu0 0
    %411 = vmatpush1.bf16.msra.mxu0 %v394
    %412 = vmatprep.subr.bf16.mxu0 0
    %413 = vmatpush1.bf16.msra.mxu0 %v395
    %414 = vmatprep.subr.bf16.mxu0 0
    %415 = vmatpush1.bf16.msra.mxu0 %v396
    %416 = vmatprep.subr.bf16.mxu0 0
    %417 = vmatpush1.bf16.msra.mxu0 %v397
    %418 = vmatprep.subr.bf16.mxu0 0
    %419 = vmatpush1.bf16.msra.mxu0 %v398
    %420 = vmatprep.subr.bf16.mxu0 0
    %421 = vmatpush1.bf16.msra.mxu0 %v399
    %422 = vmatprep.subr.bf16.mxu0 0
    %423 = vmatpush1.bf16.msra.mxu0 %v400
    %424 = vmatprep.subr.bf16.mxu0 0
    %425 = vmatpush1.bf16.msra.mxu0 %v401
    %426 = vmatprep.subr.bf16.mxu0 0
    %427 = vmatpush1.bf16.msra.mxu0 0
    %428 = vmatprep.subr.bf16.mxu0 0
    %429 = vmatpush1.bf16.msra.mxu0 0
    %430 = vmatprep.subr.bf16.mxu0 0
    %431 = vmatpush1.bf16.msra.mxu0 0
    %432 = vmatprep.subr.bf16.mxu0 0
    %433 = vmatpush1.bf16.msra.mxu0 0
    %434 = vmatprep.subr.bf16.mxu0 0
    %435 = vmatpush1.bf16.msra.mxu0 0
    %436 = vmatprep.subr.bf16.mxu0 0
    %437 = vmatpush1.bf16.msra.mxu0 0
    %438 = vmatprep.subr.bf16.mxu0 0
    %439 = vmatpush1.bf16.msra.mxu0 0
    %440 = vmatprep.subr.bf16.mxu0 0
    %441 = vmatpush1.bf16.msra.mxu0 0
    %442 = vmatprep.mubr.bf16.mxu0 0
    %443 = vmatmul.mubr.bf16.gmra.mrb[0].mxu0 %v338
    %v444 = vpop.f32.mrb[0].mxu0
    %v445 = vadd.f32 %v360, %v444
    %v446 = vpop.f32.mrb[0].mxu0
    %v447 = vpop.f32.mrb[0].mxu0
    %v448 = vadd.f32 %v360, %v447
    %v449 = vpop.f32.mrb[0].mxu0
    %450 = vdwg.mxu0
    %v451 = vmax.f32 %v445, 0.0
    %v452 = vmax.f32 %v448, 0.0
    %v453 = vpack.c.bf16 %v452, %v451
    %v454 = vld [vmem:[#allocation7] sm:$0xf]
    %v455 = vld [vmem:[#allocation7 + $0x4] sm:$0xf]
    %v456 = vld [vmem:[#allocation7 + $0x8] sm:$0xf]
    %v457 = vld [vmem:[#allocation7 + $0xc] sm:$0xf]
    %v458 = vld [vmem:[#allocation7 + $0x10] sm:$0xf]
    %v459 = vld [vmem:[#allocation7 + $0x14] sm:$0xf]
    %v460 = vld [vmem:[#allocation7 + $0x18] sm:$0xf]
    %v461 = vld [vmem:[#allocation7 + $0x1c] sm:$0xf]
    %v462 = vld [vmem:[#allocation7 + $0x20] sm:$0xf]
    %v463 = vld [vmem:[#allocation7 + $0x24] sm:$0xf]
    %v464 = vld [vmem:[#allocation7 + $0x28] sm:$0xf]
    %v465 = vld [vmem:[#allocation7 + $0x2c] sm:$0xf]
    %v466 = vld [vmem:[#allocation7 + $0x30] sm:$0xf]
    %v467 = vld [vmem:[#allocation7 + $0x34] sm:$0xf]
    %v468 = vld [vmem:[#allocation7 + $0x38] sm:$0xf]
    %v469 = vld [vmem:[#allocation7 + $0x3c] sm:$0xf]
    %v470 = vld [vmem:[%s8] sm:$0x1]
    %v472 = vlaneseq
    %v473 = vshrl.u32 %v472, 7
    %v474 = vsub.s32 0, %v473
    %v475 = vrot.slane %v470, %v474
    %v493 = vunpack.c.l.b16 %v454
    %v494 = vunpack.c.l.b16 %v455
    %v495 = vunpack.c.l.b16 %v456
    %v496 = vunpack.c.l.b16 %v457
    %v497 = vunpack.c.l.b16 %v458
    %v498 = vunpack.c.l.b16 %v459
    %v499 = vunpack.c.l.b16 %v460
    %v500 = vunpack.c.l.b16 %v461
    %v501 = vunpack.c.l.b16 %v462
    %v502 = vunpack.c.l.b16 %v463
    %v503 = vunpack.c.l.b16 %v464
    %v504 = vunpack.c.l.b16 %v465
    %v505 = vunpack.c.l.b16 %v466
    %v506 = vunpack.c.l.b16 %v467
    %v507 = vunpack.c.l.b16 %v468
    %v508 = vunpack.c.l.b16 %v469
    %v509 = vpack.c.b16 %v494, %v493
    %v510 = vpack.c.b16 %v496, %v495
    %v511 = vpack.c.b16 %v498, %v497
    %v512 = vpack.c.b16 %v500, %v499
    %v513 = vpack.c.b16 %v502, %v501
    %v514 = vpack.c.b16 %v504, %v503
    %v515 = vpack.c.b16 %v506, %v505
    %v516 = vpack.c.b16 %v508, %v507
    %525 = vmatprep.subr.bf16.mxu0 0
    %526 = vmatpush1.bf16.msra.mxu0 %v509
    %527 = vmatprep.subr.bf16.mxu0 0
    %528 = vmatpush1.bf16.msra.mxu0 %v510
    %529 = vmatprep.subr.bf16.mxu0 0
    %530 = vmatpush1.bf16.msra.mxu0 %v511
    %531 = vmatprep.subr.bf16.mxu0 0
    %532 = vmatpush1.bf16.msra.mxu0 %v512
    %533 = vmatprep.subr.bf16.mxu0 0
    %534 = vmatpush1.bf16.msra.mxu0 %v513
    %535 = vmatprep.subr.bf16.mxu0 0
    %536 = vmatpush1.bf16.msra.mxu0 %v514
    %537 = vmatprep.subr.bf16.mxu0 0
    %538 = vmatpush1.bf16.msra.mxu0 %v515
    %539 = vmatprep.subr.bf16.mxu0 0
    %540 = vmatpush1.bf16.msra.mxu0 %v516
    %541 = vmatprep.subr.bf16.mxu0 0
    %542 = vmatpush1.bf16.msra.mxu0 0
    %543 = vmatprep.subr.bf16.mxu0 0
    %544 = vmatpush1.bf16.msra.mxu0 0
    %545 = vmatprep.subr.bf16.mxu0 0
    %546 = vmatpush1.bf16.msra.mxu0 0
    %547 = vmatprep.subr.bf16.mxu0 0
    %548 = vmatpush1.bf16.msra.mxu0 0
    %549 = vmatprep.subr.bf16.mxu0 0
    %550 = vmatpush1.bf16.msra.mxu0 0
    %551 = vmatprep.subr.bf16.mxu0 0
    %552 = vmatpush1.bf16.msra.mxu0 0
    %553 = vmatprep.subr.bf16.mxu0 0
    %554 = vmatpush1.bf16.msra.mxu0 0
    %555 = vmatprep.subr.bf16.mxu0 0
    %556 = vmatpush1.bf16.msra.mxu0 0
    %557 = vmatprep.mubr.bf16.mxu0 0
    %558 = vmatmul.mubr.bf16.gmra.mrb[0].mxu0 %v453
    %v559 = vpop.f32.mrb[0].mxu0
    %v560 = vadd.f32 %v475, %v559
    %v561 = vpop.f32.mrb[0].mxu0
    %v562 = vpop.f32.mrb[0].mxu0
    %v563 = vadd.f32 %v475, %v562
    %v564 = vpop.f32.mrb[0].mxu0
    %565 = vdwg.mxu0
    %v566 = vpack.c.bf16 %v563, %v560
    %v568 = vunpack.c.l.b16 %v566
    %v569 = vunpack.c.h.b16 %v566
    %v570 = vpack.c.b16 %v568, %v568
    %v571 = vpack.c.b16 %v569, %v569
    %574 = vst [vmem:[#allocation8] sm:$0xf] %v570
    %575 = vst [vmem:[#allocation8 + $0x4] sm:$0xf] %v571
    // Predicated region
    $region50: #{tpu_custom_call.1} parent=1 // pred_check
      _
    $region51: #{tpu_custom_call.1} parent=1 // pred_check_branch
      %577 = sbr.rel (0) target = $region53
    $region52: #{tpu_custom_call.1} parent=1 // pred_region
      %s579 = ssub.s32 128, 128
      %580 = vsyncadd [#allocation4], %s579
      %s581 = sshll.u32 [#allocation8], 4
      %s582 = int_to_ptr.vmem [resolvable:$true] %s581
      %587 = dma.vmem_to_hbm [thread:$0]  %s582, 128, %s9, [#allocation4], 64, 64, 4
    $region53: #{tpu_custom_call.1} parent=1 // pred_fallthru
      _
    // Predicated region
    $region54: #{tpu_custom_call.1} parent=1 // pred_check
      _
    $region55: #{tpu_custom_call.1} parent=1 // pred_check_branch
      %589 = sbr.rel (0) target = $region57
    $region56: #{tpu_custom_call.1} parent=1 // pred_region
      %590 = dma.done [#allocation4], 128
    $region57: #{tpu_custom_call.1} parent=1 // pred_fallthru
      _
    %591 = vsyncpa [#allocation3], 1
    %592 = vsyncpa [#allocation6], 1
    %593 = vsyncpa [#allocation4], 1

</llo_original>
